<compile_context>
chip_gen: v7x
topology: tpu7x:2x2x1
jax: 0.10.0
libtpu: 0.0.40
codegen_flags: <defaults>
</compile_context>

<pallas_src>
import functools

import jax
import jax.numpy as jnp
from jax.experimental import pallas as pl
from jax.experimental.pallas import tpu as pltpu

# The reference module uses module-level globals `my_u`, `my_l`, `eps`
# (HashNet-style pairwise similarity thresholds). Defined deterministically.
MY_U = 0.9
MY_L = 0.3
EPS = 1e-5

_MAX_TILE = 256                      # fills the 2x256^2 MXU on v6e/v7x
_MIN_TILE = 128
_RHS_RESIDENT_BYTES = 16 * 1024 * 1024   # conservative: fits v7x 64 MiB VMEM
_VMEM_LIMIT_BYTES = 48 * 1024 * 1024     # <= 64 MiB (v7x), <= 128 MiB (v5e/v6e)


def _sim_loss_kernel(bn_i_ref, bn_j_ref, o_ref, *, tile, rhs_resident):
    # Grid = (row_blocks [parallel], col_blocks [arbitrary / reduction]).
    # o_ref is a (1, 1, tile) lane-dense per-row-block partial-sum accumulator,
    # resident across the column axis.
    i = pl.program_id(0)
    j = pl.program_id(1)

    @pl.when(j == 0)
    def _init():
        o_ref[...] = jnp.zeros_like(o_ref)

    # sim is symmetric -> only evaluate upper-triangular tiles (j >= i) and
    # weight strictly-off-diagonal tiles by 2 (square tiles required).
    @pl.when(j >= i)
    def _compute():
        lhs = bn_i_ref[...]
        if rhs_resident:
            # The whole bn matrix sits in VMEM (constant-index block, DMA'd
            # once); slice the current column tile locally.
            start = pl.multiple_of(j * tile, tile)
            rhs = bn_j_ref[pl.ds(start, tile), :]
        else:
            rhs = bn_j_ref[...]

        # sim = bn_i @ bn_j.T without materializing a transpose: contract
        # dim 1 of both operands directly ("NT" matmul). f32 accumulation.
        sim = jax.lax.dot_general(
            lhs, rhs,
            dimension_numbers=(((1,), (1,)), ((), ())),
            preferred_element_type=jnp.float32)

        # Fused entropy: masks are mutually exclusive (MY_U > MY_L) and the
        # "neither" case maps to arg = 1 -> -log(1) = 0, matching
        #   -log(clip(sim,eps,1))*[sim>u] + -log(clip(1-sim,eps,1))*[sim<l].
        # Both live branches give arg >= 1 - MY_L = 0.7 > EPS, so the lower
        # clamp is dead and a single minimum suffices (VPU trim).
        arg = jnp.where(sim > MY_U, sim, jnp.where(sim < MY_L, 1.0 - sim, 1.0))
        entropy = -jnp.log(jnp.minimum(arg, 1.0))

        weight = jnp.where(j == i, 1.0, 2.0).astype(jnp.float32)
        # Sublane reduction (XLU) -> lane-dense partial sum, accumulated
        # across the column-block axis.
        o_ref[...] += weight * jnp.sum(entropy, axis=0, keepdims=True)[None]


def loss_func2(b, *, use_bf16_matmul=False,
               rhs_resident_bytes=_RHS_RESIDENT_BYTES):
    """Pallas implementation of LossFunc2.forward. b: [N, D] float array."""
    b = jnp.asarray(b)
    if b.dtype != jnp.float32:
        b = b.astype(jnp.float32)
    n, d = b.shape

    # Row L2-normalization (exact reference formula).  Tiny O(N*D) op done in
    # the wrapper: drops one kernel launch + the bn HBM round-trip that a
    # separate pallas_call would add (dominant cost at small N).
    normp = jnp.sum(b * b, axis=1, keepdims=True) + 1e-10
    bn = b / jnp.sqrt(normp)
    if use_bf16_matmul:
        # Optional MXU-throughput path: bf16 operands halve the streamed
        # bytes and map natively to the MXU (f32 accumulation retained).
        # Off by default: bf16-rounded sim can flip pos/neg membership for
        # values landing near the 0.9 / 0.3 thresholds.
        bn = bn.astype(jnp.bfloat16)

    # Square tiles (required by the triangular-symmetry weighting).
    tile = _MAX_TILE if n > _MAX_TILE else _MIN_TILE
    n_pad = pl.cdiv(n, tile) * tile
    if n_pad != n:
        # Zero rows contribute exactly 0; mean still divides by the true N*N.
        bn = jnp.pad(bn, ((0, n_pad - n), (0, 0)))
    num_blocks = n_pad // tile

    itemsize = jnp.dtype(bn.dtype).itemsize
    rhs_resident = (n_pad * d * itemsize) <= rhs_resident_bytes
    if rhs_resident:
        # Constant-index full-array block: bn is DMA'd into VMEM exactly once.
        rhs_spec = pl.BlockSpec((n_pad, d), lambda i, j: (0, 0))
    else:
        rhs_spec = pl.BlockSpec((tile, d), lambda i, j: (j, 0))

    kernel = functools.partial(_sim_loss_kernel, tile=tile,
                               rhs_resident=rhs_resident)
    partials = pl.pallas_call(
        kernel,
        out_shape=jax.ShapeDtypeStruct((num_blocks, 1, tile), jnp.float32),
        grid=(num_blocks, num_blocks),
        in_specs=[pl.BlockSpec((tile, d), lambda i, j: (i, 0)), rhs_spec],
        out_specs=pl.BlockSpec((1, 1, tile), lambda i, j: (i, 0, 0)),
        compiler_params=pltpu.CompilerParams(
            dimension_semantics=("parallel", "arbitrary"),
            vmem_limit_bytes=_VMEM_LIMIT_BYTES,
        ),
    )(bn, bn)

    # Tiny final reduction + mean over the true N*N entries.
    return jnp.sum(partials) / jnp.float32(n * n)


def _reference_loss(b):
    # Pure-JAX reference mirroring the PyTorch module exactly.
    b = jnp.asarray(b, dtype=jnp.float32)
    normp = jnp.sum(b * b, axis=1, keepdims=True) + 1e-10
    bn = b / jnp.sqrt(normp)
    sim = bn @ bn.T
    pos_loc = (sim > MY_U).astype(jnp.float32)
    neg_loc = (sim < MY_L).astype(jnp.float32)
    pos_entropy = -jnp.log(jnp.clip(sim, EPS, 1.0)) * pos_loc
    neg_entropy = -jnp.log(jnp.clip(1.0 - sim, EPS, 1.0)) * neg_loc
    return jnp.mean(pos_entropy + neg_entropy)


if __name__ == "__main__":
    key = jax.random.PRNGKey(0)

    # Small shape consistent with the module (rows = hash codes / embeddings).
    N, D = 8, 32
    b = jax.random.normal(key, (N, D), dtype=jnp.float32)
    loss = loss_func2(b)
    jax.block_until_ready(loss)
    ref = _reference_loss(b)
    assert jnp.allclose(loss, ref, atol=1e-5, rtol=1e-4), (loss, ref)

    # Multi-tile grid: exercises triangular-symmetry weighting, accumulation
    # across the column axis, row padding, and the resident-RHS path.
    key2 = jax.random.PRNGKey(1)
    N2, D2 = 200, 64
    b2 = jax.random.normal(key2, (N2, D2), dtype=jnp.float32)
    loss2 = loss_func2(b2)
    jax.block_until_ready(loss2)
    ref2 = _reference_loss(b2)
    assert jnp.allclose(loss2, ref2, atol=1e-5, rtol=1e-4), (loss2, ref2)

    # Same problem, forcing the tiled-RHS fallback path (rhs restreamed).
    loss2_tiled = loss_func2(b2, rhs_resident_bytes=0)
    jax.block_until_ready(loss2_tiled)
    assert jnp.allclose(loss2_tiled, ref2, atol=1e-5, rtol=1e-4), (loss2_tiled, ref2)

    # Optional bf16 MXU path (loose tolerance: threshold flips possible).
    loss2_bf16 = loss_func2(b2, use_bf16_matmul=True)
    jax.block_until_ready(loss2_bf16)
    assert jnp.isfinite(loss2_bf16) and abs(float(loss2_bf16) - float(ref2)) < 0.05

    print("KERNEL_OK")
</pallas_src>

<mosaic_0001>
module attributes {stable_mosaic.version = 11 : i64} {
  func.func @_sim_loss_kernel(%arg0: i32, %arg1: i32, %arg2: memref<128x32xf32, #tpu.memory_space<vmem>>, %arg3: memref<128x32xf32, #tpu.memory_space<vmem>>, %arg4: memref<1x1x128xf32, #tpu.memory_space<vmem>>) attributes {dimension_semantics = [#tpu.dimension_semantics<parallel>, #tpu.dimension_semantics<arbitrary>], iteration_bounds = array<i64: 1, 1>, scalar_prefetch = 0 : i64, scratch_operands = 0 : i64, tpu.core_type = #tpu.core_type<tc>, window_params = [{transform_indices = @transform_0, window_bounds = array<i64: 128, 32>}, {pipeline_mode = #tpu.pipeline_mode<synchronous>, transform_indices = @transform_1, window_bounds = array<i64: 128, 32>}, {transform_indices = @transform_2, window_bounds = array<i64: 1, 1, 128>}]} {
    %c0_i32 = arith.constant 0 : i32
    %0 = arith.cmpi eq, %arg1, %c0_i32 : i32
    %1 = arith.extui %0 : i1 to i32
    %c0_i32_0 = arith.constant 0 : i32
    %2 = arith.cmpi ne, %1, %c0_i32_0 : i32
    scf.if %2 {
      %cst = arith.constant 0.000000e+00 : f32
      %6 = vector.broadcast %cst : f32 to vector<1x1x128xf32>
      %c0 = arith.constant 0 : index
      %c0_2 = arith.constant 0 : index
      %c0_3 = arith.constant 0 : index
      %7 = vector.load %arg4[%c0, %c0_2, %c0_3] : memref<1x1x128xf32, #tpu.memory_space<vmem>>, vector<1x1x128xf32>
      tpu.vector_store %arg4[%c0, %c0_2, %c0_3], %6 {strides = array<i32>} : memref<1x1x128xf32, #tpu.memory_space<vmem>>, vector<1x1x128xf32>,
    } else {
    }
    %3 = arith.cmpi sge, %arg1, %arg0 : i32
    %4 = arith.extui %3 : i1 to i32
    %c0_i32_1 = arith.constant 0 : i32
    %5 = arith.cmpi ne, %4, %c0_i32_1 : i32
    scf.if %5 {
      %c0 = arith.constant 0 : index
      %c0_2 = arith.constant 0 : index
      %6 = vector.load %arg2[%c0, %c0_2] : memref<128x32xf32, #tpu.memory_space<vmem>>, vector<128x32xf32>
      %c128_i32 = arith.constant 128 : i32
      %7 = arith.muli %arg1, %c128_i32 : i32
      %8 = tpu.assume_multiple %7, 128 : i32
      %9 = arith.index_cast %8 : i32 to index
      %c0_3 = arith.constant 0 : index
      %10 = vector.load %arg3[%9, %c0_3] : memref<128x32xf32, #tpu.memory_space<vmem>>, vector<128x32xf32>
      %cst = arith.constant dense<0.000000e+00> : vector<128x128xf32>
      %11 = tpu.matmul %6, %10, %cst {dimension_numbers = #tpu.dot_dimension_numbers<[1], [1], [0], [0], [0, 0, 1, 0], [], []>} : vector<128x32xf32>, vector<128x32xf32>, vector<128x128xf32> -> vector<128x128xf32>
      %cst_4 = arith.constant 0.899999976 : f32
      %12 = vector.broadcast %cst_4 : f32 to vector<128x128xf32>
      %13 = arith.cmpf ogt, %11, %12 : vector<128x128xf32>
      %cst_5 = arith.constant 3.000000e-01 : f32
      %14 = vector.broadcast %cst_5 : f32 to vector<128x128xf32>
      %15 = arith.cmpf olt, %11, %14 : vector<128x128xf32>
      %cst_6 = arith.constant 1.000000e+00 : f32
      %16 = vector.broadcast %cst_6 : f32 to vector<128x128xf32>
      %17 = arith.subf %16, %11 : vector<128x128xf32>
      %cst_7 = arith.constant 1.000000e+00 : f32
      %18 = vector.broadcast %cst_7 : f32 to vector<128x128xf32>
      %19 = arith.select %15, %17, %18 : vector<128x128xi1>, vector<128x128xf32>
      %20 = arith.select %13, %11, %19 : vector<128x128xi1>, vector<128x128xf32>
      %cst_8 = arith.constant 1.000000e+00 : f32
      %21 = vector.broadcast %cst_8 : f32 to vector<128x128xf32>
      %22 = arith.minimumf %20, %21 : vector<128x128xf32>
      %23 = math.log %22 : vector<128x128xf32>
      %cst_9 = arith.constant 0.000000e+00 : f32
      %24 = vector.broadcast %cst_9 : f32 to vector<128x128xf32>
      %25 = arith.subf %24, %23 : vector<128x128xf32>
      %26 = arith.cmpi eq, %arg1, %arg0 : i32
      %cst_10 = arith.constant 1.000000e+00 : f32
      %cst_11 = arith.constant 2.000000e+00 : f32
      %27 = arith.select %26, %cst_10, %cst_11 : f32
      %c0_12 = arith.constant 0 : index
      %c0_13 = arith.constant 0 : index
      %c0_14 = arith.constant 0 : index
      %28 = vector.load %arg4[%c0_12, %c0_13, %c0_14] : memref<1x1x128xf32, #tpu.memory_space<vmem>>, vector<1x1x128xf32>
      %cst_15 = arith.constant dense<0.000000e+00> : vector<128xf32>
      %29 = vector.multi_reduction <add>, %25, %cst_15 [0] : vector<128x128xf32> to vector<128xf32>
      %30 = vector.shape_cast %29 : vector<128xf32> to vector<1x128xf32>
      %31 = vector.shape_cast %30 : vector<1x128xf32> to vector<1x1x128xf32>
      %32 = vector.broadcast %27 : f32 to vector<1x1x128xf32>
      %33 = arith.mulf %32, %31 : vector<1x1x128xf32>
      %34 = arith.addf %28, %33 : vector<1x1x128xf32>
      %c0_16 = arith.constant 0 : index
      %c0_17 = arith.constant 0 : index
      %c0_18 = arith.constant 0 : index
      %35 = vector.load %arg4[%c0_16, %c0_17, %c0_18] : memref<1x1x128xf32, #tpu.memory_space<vmem>>, vector<1x1x128xf32>
      tpu.vector_store %arg4[%c0_16, %c0_17, %c0_18], %34 {strides = array<i32>} : memref<1x1x128xf32, #tpu.memory_space<vmem>>, vector<1x1x128xf32>,
    } else {
    }
    return
  }
  func.func @transform_0(%arg0: i32, %arg1: i32) -> (i32, i32) {
    %c0_i32 = arith.constant 0 : i32
    %c0_i32_0 = arith.constant 0 : i32
    return %arg0, %c0_i32 : i32, i32
  }
  func.func @transform_1(%arg0: i32, %arg1: i32) -> (i32, i32) {
    %c0_i32 = arith.constant 0 : i32
    %c0_i32_0 = arith.constant 0 : i32
    %c0_i32_1 = arith.constant 0 : i32
    return %c0_i32, %c0_i32_0 : i32, i32
  }
  func.func @transform_2(%arg0: i32, %arg1: i32) -> (i32, i32, i32) {
    %c0_i32 = arith.constant 0 : i32
    %c0_i32_0 = arith.constant 0 : i32
    %c0_i32_1 = arith.constant 0 : i32
    return %arg0, %c0_i32, %c0_i32_0 : i32, i32, i32
  }
}

</mosaic_0001>

<llo_original>
// kernel: tpu_custom_call.1
$region0: #{tpu_custom_call.1}
  #allocation0 [shape = 'u32[]', space=smem, size = 0x4, offset = 0x4, fixed_abs, tag = 'smem constant byte address 0x4 - core index']
  #allocation1 [shape = 'u32[144,128]{1,0:T(1,128)}', space=vmem, size = 0x12000, scoped, tag = 'internal scratch']
  %s0 = inlined_call_operand.vmem [shape: f32[128,32], index: 0, kind: input, shape index: {}]
  %s1 = inlined_call_operand.vmem [shape: f32[128,32], index: 1, kind: input, shape index: {}]
  %s2 = inlined_call_operand.hbm [shape: f32[1,1,128], index: 2, kind: output, shape index: {}]
  %s3 = sld [smem:[#allocation0]]
  $region26: #{tpu_custom_call.1} parent=0
    _
  %s5 = ssub.s32 1, %s3
  %s6 = scalar_select 0, %s5, %s3
  $region1: #{tpu_custom_call.1} parent=0
    #allocation2 [shape = 'u8[512]{0}', space=vmem, size = 0x400, scoped, tag = 'output window, operand 0, single buffered']
    #allocation3 [shape = 's32[1]{0}', space=sflag, size = 0x4, scoped, tag = 'scoped memory for tpu_custom_call.1']
    %7 = vsyncpa [#allocation3], 0
    // Predicated region
    $region2: #{tpu_custom_call.1} parent=1 // pred_check
      _
    $region3: #{tpu_custom_call.1} parent=1 // pred_check_branch
      %9 = sbr.rel (0) target = $region5
    $region4: #{tpu_custom_call.1} parent=1 // pred_region
      _
    $region5: #{tpu_custom_call.1} parent=1 // pred_fallthru
      _
    // Predicated region
    $region6: #{tpu_custom_call.1} parent=1 // pred_check
      _
    $region7: #{tpu_custom_call.1} parent=1 // pred_check_branch
      %11 = sbr.rel (0) target = $region9
    $region8: #{tpu_custom_call.1} parent=1 // pred_region
      _
    $region9: #{tpu_custom_call.1} parent=1 // pred_fallthru
      _
    %p12 = scmp.eq.s32.totalorder 0, 0
    // Predicated region
    $region10: #{tpu_custom_call.1} parent=1 // pred_check
      %p13 = pneg %p12
    $region11: #{tpu_custom_call.1} parent=1 // pred_check_branch
      %15 = sbr.rel (%p13) target = $region13
    $region12: #{tpu_custom_call.1} parent=1 // pred_region
      %16 = vst [vmem:[#allocation2] sm:$0x1] 0.0
    $region13: #{tpu_custom_call.1} parent=1 // pred_fallthru
      _
    %p17 = scmp.ge.s32.totalorder 0, 0
    // Predicated region
    $region14: #{tpu_custom_call.1} parent=1 // pred_check
      %p18 = pneg %p17
    $region15: #{tpu_custom_call.1} parent=1 // pred_check_branch
      %20 = sbr.rel (%p18) target = $region17
    $region16: #{tpu_custom_call.1} parent=1 // pred_region
      %v21 = vld [vmem:[%s0] sm:$0xff]
      %v22 = vld [vmem:[%s0 + $0x8] sm:$0xff]
      %v23 = vld [vmem:[%s0 + $0x10] sm:$0xff]
      %v24 = vld [vmem:[%s0 + $0x18] sm:$0xff]
      %v25 = vld [vmem:[%s0 + $0x20] sm:$0xff]
      %v26 = vld [vmem:[%s0 + $0x28] sm:$0xff]
      %v27 = vld [vmem:[%s0 + $0x30] sm:$0xff]
      %v28 = vld [vmem:[%s0 + $0x38] sm:$0xff]
      %v29 = vld [vmem:[%s0 + $0x40] sm:$0xff]
      %v30 = vld [vmem:[%s0 + $0x48] sm:$0xff]
      %v31 = vld [vmem:[%s0 + $0x50] sm:$0xff]
      %v32 = vld [vmem:[%s0 + $0x58] sm:$0xff]
      %v33 = vld [vmem:[%s0 + $0x60] sm:$0xff]
      %v34 = vld [vmem:[%s0 + $0x68] sm:$0xff]
      %v35 = vld [vmem:[%s0 + $0x70] sm:$0xff]
      %v36 = vld [vmem:[%s0 + $0x78] sm:$0xff]
      %s37 = smul.u32 0, 128
      %s38 = scalar_lea.vmem %s1, %s37
      %v39 = vld [vmem:[%s38] sm:$0xff]
      %v40 = vld [vmem:[%s38 + $0x8] sm:$0xff]
      %v41 = vld [vmem:[%s38 + $0x10] sm:$0xff]
      %v42 = vld [vmem:[%s38 + $0x18] sm:$0xff]
      %v43 = vld [vmem:[%s38 + $0x20] sm:$0xff]
      %v44 = vld [vmem:[%s38 + $0x28] sm:$0xff]
      %v45 = vld [vmem:[%s38 + $0x30] sm:$0xff]
      %v46 = vld [vmem:[%s38 + $0x38] sm:$0xff]
      %v47 = vld [vmem:[%s38 + $0x40] sm:$0xff]
      %v48 = vld [vmem:[%s38 + $0x48] sm:$0xff]
      %v49 = vld [vmem:[%s38 + $0x50] sm:$0xff]
      %v50 = vld [vmem:[%s38 + $0x58] sm:$0xff]
      %v51 = vld [vmem:[%s38 + $0x60] sm:$0xff]
      %v52 = vld [vmem:[%s38 + $0x68] sm:$0xff]
      %v53 = vld [vmem:[%s38 + $0x70] sm:$0xff]
      %v54 = vld [vmem:[%s38 + $0x78] sm:$0xff]
      %vm55 = vcmask 261120
      %v57 = vsel %vm55, %v21, 0
      %v60 = vsel %vm55, %v22, 0
      %v63 = vsel %vm55, %v23, 0
      %v66 = vsel %vm55, %v24, 0
      %v69 = vsel %vm55, %v25, 0
      %v72 = vsel %vm55, %v26, 0
      %v75 = vsel %vm55, %v27, 0
      %v78 = vsel %vm55, %v28, 0
      %v81 = vsel %vm55, %v29, 0
      %v84 = vsel %vm55, %v30, 0
      %v87 = vsel %vm55, %v31, 0
      %v90 = vsel %vm55, %v32, 0
      %v93 = vsel %vm55, %v33, 0
      %v96 = vsel %vm55, %v34, 0
      %v99 = vsel %vm55, %v35, 0
      %v102 = vsel %vm55, %v36, 0
      %v105 = vsel %vm55, %v39, 0
      %v108 = vsel %vm55, %v40, 0
      %v111 = vsel %vm55, %v41, 0
      %v114 = vsel %vm55, %v42, 0
      %v117 = vsel %vm55, %v43, 0
      %v120 = vsel %vm55, %v44, 0
      %v123 = vsel %vm55, %v45, 0
      %v126 = vsel %vm55, %v46, 0
      %v129 = vsel %vm55, %v47, 0
      %v132 = vsel %vm55, %v48, 0
      %v135 = vsel %vm55, %v49, 0
      %v138 = vsel %vm55, %v50, 0
      %v141 = vsel %vm55, %v51, 0
      %v144 = vsel %vm55, %v52, 0
      %v147 = vsel %vm55, %v53, 0
      %v150 = vsel %vm55, %v54, 0
      %152 = vmatprep.subr.mxu0 0.0
      %153 = vmatpush1.xpose.msra.mxu0 %v105
      %154 = vmatprep.subr.mxu0 0.0
      %155 = vmatpush1.xpose.msra.mxu0 %v108
      %156 = vmatprep.subr.mxu0 0.0
      %157 = vmatpush1.xpose.msra.mxu0 %v111
      %158 = vmatprep.subr.mxu0 0.0
      %159 = vmatpush1.xpose.msra.mxu0 %v114
      %160 = vmatprep.subr.mxu0 0.0
      %161 = vmatpush1.xpose.msra.mxu0 %v117
      %162 = vmatprep.subr.mxu0 0.0
      %163 = vmatpush1.xpose.msra.mxu0 %v120
      %164 = vmatprep.subr.mxu0 0.0
      %165 = vmatpush1.xpose.msra.mxu0 %v123
      %166 = vmatprep.subr.mxu0 0.0
      %167 = vmatpush1.xpose.msra.mxu0 %v126
      %168 = vmatprep.subr.mxu0 0.0
      %169 = vmatpush1.xpose.msra.mxu0 %v129
      %170 = vmatprep.subr.mxu0 0.0
      %171 = vmatpush1.xpose.msra.mxu0 %v132
      %172 = vmatprep.subr.mxu0 0.0
      %173 = vmatpush1.xpose.msra.mxu0 %v135
      %174 = vmatprep.subr.mxu0 0.0
      %175 = vmatpush1.xpose.msra.mxu0 %v138
      %176 = vmatprep.subr.mxu0 0.0
      %177 = vmatpush1.xpose.msra.mxu0 %v141
      %178 = vmatprep.subr.mxu0 0.0
      %179 = vmatpush1.xpose.msra.mxu0 %v144
      %180 = vmatprep.subr.mxu0 0.0
      %181 = vmatpush1.xpose.msra.mxu0 %v147
      %182 = vmatprep.subr.mxu0 0.0
      %183 = vmatpush1.xpose.msra.mxu0 %v150
      %184 = vmatprep.subr.mxu0 0.0
      %185 = vmatpush1.xpose.msra.mxu0 0.0
      %186 = vmatprep.subr.mxu0 0.0
      %187 = vmatpush1.xpose.msra.mxu0 0.0
      %188 = vmatprep.subr.mxu0 0.0
      %189 = vmatpush1.xpose.msra.mxu0 0.0
      %190 = vmatprep.subr.mxu0 0.0
      %191 = vmatpush1.xpose.msra.mxu0 0.0
      %192 = vmatprep.subr.mxu0 0.0
      %193 = vmatpush1.xpose.msra.mxu0 0.0
      %194 = vmatprep.subr.mxu0 0.0
      %195 = vmatpush1.xpose.msra.mxu0 0.0
      %196 = vmatprep.subr.mxu0 0.0
      %197 = vmatpush1.xpose.msra.mxu0 0.0
      %198 = vmatprep.subr.mxu0 0.0
      %199 = vmatpush1.xpose.msra.mxu0 0.0
      %200 = vmatprep.subr.mxu0 0.0
      %201 = vmatpush1.xpose.msra.mxu0 0.0
      %202 = vmatprep.subr.mxu0 0.0
      %203 = vmatpush1.xpose.msra.mxu0 0.0
      %204 = vmatprep.subr.mxu0 0.0
      %205 = vmatpush1.xpose.msra.mxu0 0.0
      %206 = vmatprep.subr.mxu0 0.0
      %207 = vmatpush1.xpose.msra.mxu0 0.0
      %208 = vmatprep.subr.mxu0 0.0
      %209 = vmatpush1.xpose.msra.mxu0 0.0
      %210 = vmatprep.subr.mxu0 0.0
      %211 = vmatpush1.xpose.msra.mxu0 0.0
      %212 = vmatprep.subr.mxu0 0.0
      %213 = vmatpush1.xpose.msra.mxu0 0.0
      %214 = vmatprep.subr.mxu0 0.0
      %215 = vmatpush1.xpose.msra.mxu0 0.0
      %216 = vmatprep.mubr.f32.mxu0 0.0
      %217 = vmatmul.mubr.f32.gmra.mrb[0].mxu0 %v57
      %v218 = vpop.f32.mrb[0].mxu0
      %v219 = vadd.f32 0.0, %v218
      %v220 = vpop.f32.mrb[0].mxu0
      %221 = vmatprep.mubr.f32.mxu0 0.0
      %222 = vmatmul.mubr.f32.gmra.mrb[0].mxu0 %v60
      %v223 = vpop.f32.mrb[0].mxu0
      %v224 = vadd.f32 0.0, %v223
      %v225 = vpop.f32.mrb[0].mxu0
      %226 = vmatprep.mubr.f32.mxu0 0.0
      %227 = vmatmul.mubr.f32.gmra.mrb[0].mxu0 %v63
      %v228 = vpop.f32.mrb[0].mxu0
      %v229 = vadd.f32 0.0, %v228
      %v230 = vpop.f32.mrb[0].mxu0
      %231 = vmatprep.mubr.f32.mxu0 0.0
      %232 = vmatmul.mubr.f32.gmra.mrb[0].mxu0 %v66
      %v233 = vpop.f32.mrb[0].mxu0
      %v234 = vadd.f32 0.0, %v233
      %v235 = vpop.f32.mrb[0].mxu0
      %236 = vmatprep.mubr.f32.mxu0 0.0
      %237 = vmatmul.mubr.f32.gmra.mrb[0].mxu0 %v69
      %v238 = vpop.f32.mrb[0].mxu0
      %v239 = vadd.f32 0.0, %v238
      %v240 = vpop.f32.mrb[0].mxu0
      %241 = vmatprep.mubr.f32.mxu0 0.0
      %242 = vmatmul.mubr.f32.gmra.mrb[0].mxu0 %v72
      %v243 = vpop.f32.mrb[0].mxu0
      %v244 = vadd.f32 0.0, %v243
      %v245 = vpop.f32.mrb[0].mxu0
      %246 = vmatprep.mubr.f32.mxu0 0.0
      %247 = vmatmul.mubr.f32.gmra.mrb[0].mxu0 %v75
      %v248 = vpop.f32.mrb[0].mxu0
      %v249 = vadd.f32 0.0, %v248
      %v250 = vpop.f32.mrb[0].mxu0
      %251 = vmatprep.mubr.f32.mxu0 0.0
      %252 = vmatmul.mubr.f32.gmra.mrb[0].mxu0 %v78
      %v253 = vpop.f32.mrb[0].mxu0
      %v254 = vadd.f32 0.0, %v253
      %v255 = vpop.f32.mrb[0].mxu0
      %256 = vmatprep.mubr.f32.mxu0 0.0
      %257 = vmatmul.mubr.f32.gmra.mrb[0].mxu0 %v81
      %v258 = vpop.f32.mrb[0].mxu0
      %v259 = vadd.f32 0.0, %v258
      %v260 = vpop.f32.mrb[0].mxu0
      %261 = vmatprep.mubr.f32.mxu0 0.0
      %262 = vmatmul.mubr.f32.gmra.mrb[0].mxu0 %v84
      %v263 = vpop.f32.mrb[0].mxu0
      %v264 = vadd.f32 0.0, %v263
      %v265 = vpop.f32.mrb[0].mxu0
      %266 = vmatprep.mubr.f32.mxu0 0.0
      %267 = vmatmul.mubr.f32.gmra.mrb[0].mxu0 %v87
      %v268 = vpop.f32.mrb[0].mxu0
      %v269 = vadd.f32 0.0, %v268
      %v270 = vpop.f32.mrb[0].mxu0
      %271 = vmatprep.mubr.f32.mxu0 0.0
      %272 = vmatmul.mubr.f32.gmra.mrb[0].mxu0 %v90
      %v273 = vpop.f32.mrb[0].mxu0
      %v274 = vadd.f32 0.0, %v273
      %v275 = vpop.f32.mrb[0].mxu0
      %276 = vmatprep.mubr.f32.mxu0 0.0
      %277 = vmatmul.mubr.f32.gmra.mrb[0].mxu0 %v93
      %v278 = vpop.f32.mrb[0].mxu0
      %v279 = vadd.f32 0.0, %v278
      %v280 = vpop.f32.mrb[0].mxu0
      %281 = vmatprep.mubr.f32.mxu0 0.0
      %282 = vmatmul.mubr.f32.gmra.mrb[0].mxu0 %v96
      %v283 = vpop.f32.mrb[0].mxu0
      %v284 = vadd.f32 0.0, %v283
      %v285 = vpop.f32.mrb[0].mxu0
      %286 = vmatprep.mubr.f32.mxu0 0.0
      %287 = vmatmul.mubr.f32.gmra.mrb[0].mxu0 %v99
      %v288 = vpop.f32.mrb[0].mxu0
      %v289 = vadd.f32 0.0, %v288
      %v290 = vpop.f32.mrb[0].mxu0
      %291 = vmatprep.mubr.f32.mxu0 0.0
      %292 = vmatmul.mubr.f32.gmra.mrb[0].mxu0 %v102
      %v293 = vpop.f32.mrb[0].mxu0
      %v294 = vadd.f32 0.0, %v293
      %v295 = vpop.f32.mrb[0].mxu0
      %296 = vdwg.mxu0
      %vm297 = vcmp.gt.f32.partialorder %v219, 0.9
      %vm298 = vcmp.gt.f32.partialorder %v224, 0.9
      %vm299 = vcmp.gt.f32.partialorder %v229, 0.9
      %vm300 = vcmp.gt.f32.partialorder %v234, 0.9
      %vm301 = vcmp.gt.f32.partialorder %v239, 0.9
      %vm302 = vcmp.gt.f32.partialorder %v244, 0.9
      %vm303 = vcmp.gt.f32.partialorder %v249, 0.9
      %vm304 = vcmp.gt.f32.partialorder %v254, 0.9
      %vm305 = vcmp.gt.f32.partialorder %v259, 0.9
      %vm306 = vcmp.gt.f32.partialorder %v264, 0.9
      %vm307 = vcmp.gt.f32.partialorder %v269, 0.9
      %vm308 = vcmp.gt.f32.partialorder %v274, 0.9
      %vm309 = vcmp.gt.f32.partialorder %v279, 0.9
      %vm310 = vcmp.gt.f32.partialorder %v284, 0.9
      %vm311 = vcmp.gt.f32.partialorder %v289, 0.9
      %vm312 = vcmp.gt.f32.partialorder %v294, 0.9
      %vm313 = vcmp.lt.f32.partialorder %v219, 0.3
      %vm314 = vcmp.lt.f32.partialorder %v224, 0.3
      %vm315 = vcmp.lt.f32.partialorder %v229, 0.3
      %vm316 = vcmp.lt.f32.partialorder %v234, 0.3
      %vm317 = vcmp.lt.f32.partialorder %v239, 0.3
      %vm318 = vcmp.lt.f32.partialorder %v244, 0.3
      %vm319 = vcmp.lt.f32.partialorder %v249, 0.3
      %vm320 = vcmp.lt.f32.partialorder %v254, 0.3
      %vm321 = vcmp.lt.f32.partialorder %v259, 0.3
      %vm322 = vcmp.lt.f32.partialorder %v264, 0.3
      %vm323 = vcmp.lt.f32.partialorder %v269, 0.3
      %vm324 = vcmp.lt.f32.partialorder %v274, 0.3
      %vm325 = vcmp.lt.f32.partialorder %v279, 0.3
      %vm326 = vcmp.lt.f32.partialorder %v284, 0.3
      %vm327 = vcmp.lt.f32.partialorder %v289, 0.3
      %vm328 = vcmp.lt.f32.partialorder %v294, 0.3
      %v329 = vsub.f32 1.0, %v219
      %v330 = vsub.f32 1.0, %v224
      %v331 = vsub.f32 1.0, %v229
      %v332 = vsub.f32 1.0, %v234
      %v333 = vsub.f32 1.0, %v239
      %v334 = vsub.f32 1.0, %v244
      %v335 = vsub.f32 1.0, %v249
      %v336 = vsub.f32 1.0, %v254
      %v337 = vsub.f32 1.0, %v259
      %v338 = vsub.f32 1.0, %v264
      %v339 = vsub.f32 1.0, %v269
      %v340 = vsub.f32 1.0, %v274
      %v341 = vsub.f32 1.0, %v279
      %v342 = vsub.f32 1.0, %v284
      %v343 = vsub.f32 1.0, %v289
      %v344 = vsub.f32 1.0, %v294
      %v345 = vsel %vm313, %v329, 1.0
      %v346 = vsel %vm314, %v330, 1.0
      %v347 = vsel %vm315, %v331, 1.0
      %v348 = vsel %vm316, %v332, 1.0
      %v349 = vsel %vm317, %v333, 1.0
      %v350 = vsel %vm318, %v334, 1.0
      %v351 = vsel %vm319, %v335, 1.0
      %v352 = vsel %vm320, %v336, 1.0
      %v353 = vsel %vm321, %v337, 1.0
      %v354 = vsel %vm322, %v338, 1.0
      %v355 = vsel %vm323, %v339, 1.0
      %v356 = vsel %vm324, %v340, 1.0
      %v357 = vsel %vm325, %v341, 1.0
      %v358 = vsel %vm326, %v342, 1.0
      %v359 = vsel %vm327, %v343, 1.0
      %v360 = vsel %vm328, %v344, 1.0
      %v361 = vsel %vm297, %v219, %v345
      %v362 = vsel %vm298, %v224, %v346
      %v363 = vsel %vm299, %v229, %v347
      %v364 = vsel %vm300, %v234, %v348
      %v365 = vsel %vm301, %v239, %v349
      %v366 = vsel %vm302, %v244, %v350
      %v367 = vsel %vm303, %v249, %v351
      %v368 = vsel %vm304, %v254, %v352
      %v369 = vsel %vm305, %v259, %v353
      %v370 = vsel %vm306, %v264, %v354
      %v371 = vsel %vm307, %v269, %v355
      %v372 = vsel %vm308, %v274, %v356
      %v373 = vsel %vm309, %v279, %v357
      %v374 = vsel %vm310, %v284, %v358
      %v375 = vsel %vm311, %v289, %v359
      %v376 = vsel %vm312, %v294, %v360
      %v377 = vmin.f32 %v361, 1.0
      %v378 = vmin.f32 %v362, 1.0
      %v379 = vmin.f32 %v363, 1.0
      %v380 = vmin.f32 %v364, 1.0
      %v381 = vmin.f32 %v365, 1.0
      %v382 = vmin.f32 %v366, 1.0
      %v383 = vmin.f32 %v367, 1.0
      %v384 = vmin.f32 %v368, 1.0
      %v385 = vmin.f32 %v369, 1.0
      %v386 = vmin.f32 %v370, 1.0
      %v387 = vmin.f32 %v371, 1.0
      %v388 = vmin.f32 %v372, 1.0
      %v389 = vmin.f32 %v373, 1.0
      %v390 = vmin.f32 %v374, 1.0
      %v391 = vmin.f32 %v375, 1.0
      %v392 = vmin.f32 %v376, 1.0
      %v393 = vlog2.pop %v377
      %v394 = vmul.f32 %v393, 0.6931472
      %v395 = vlog2.pop %v378
      %v396 = vmul.f32 %v395, 0.6931472
      %v397 = vlog2.pop %v379
      %v398 = vmul.f32 %v397, 0.6931472
      %v399 = vlog2.pop %v380
      %v400 = vmul.f32 %v399, 0.6931472
      %v401 = vlog2.pop %v381
      %v402 = vmul.f32 %v401, 0.6931472
      %v403 = vlog2.pop %v382
      %v404 = vmul.f32 %v403, 0.6931472
      %v405 = vlog2.pop %v383
      %v406 = vmul.f32 %v405, 0.6931472
      %v407 = vlog2.pop %v384
      %v408 = vmul.f32 %v407, 0.6931472
      %v409 = vlog2.pop %v385
      %v410 = vmul.f32 %v409, 0.6931472
      %v411 = vlog2.pop %v386
      %v412 = vmul.f32 %v411, 0.6931472
      %v413 = vlog2.pop %v387
      %v414 = vmul.f32 %v413, 0.6931472
      %v415 = vlog2.pop %v388
      %v416 = vmul.f32 %v415, 0.6931472
      %v417 = vlog2.pop %v389
      %v418 = vmul.f32 %v417, 0.6931472
      %v419 = vlog2.pop %v390
      %v420 = vmul.f32 %v419, 0.6931472
      %v421 = vlog2.pop %v391
      %v422 = vmul.f32 %v421, 0.6931472
      %v423 = vlog2.pop %v392
      %v424 = vmul.f32 %v423, 0.6931472
      %v425 = vsub.f32 0.0, %v394
      %v426 = vsub.f32 0.0, %v396
      %v427 = vsub.f32 0.0, %v398
      %v428 = vsub.f32 0.0, %v400
      %v429 = vsub.f32 0.0, %v402
      %v430 = vsub.f32 0.0, %v404
      %v431 = vsub.f32 0.0, %v406
      %v432 = vsub.f32 0.0, %v408
      %v433 = vsub.f32 0.0, %v410
      %v434 = vsub.f32 0.0, %v412
      %v435 = vsub.f32 0.0, %v414
      %v436 = vsub.f32 0.0, %v416
      %v437 = vsub.f32 0.0, %v418
      %v438 = vsub.f32 0.0, %v420
      %v439 = vsub.f32 0.0, %v422
      %v440 = vsub.f32 0.0, %v424
      %p441 = scmp.eq.s32.totalorder 0, 0
      %s442 = scalar_select %p441, 1.0, 2.0
      %v443 = vld [vmem:[#allocation2] sm:$0x1]
      %v444 = vadd.f32 %v425, %v426
      %v445 = vadd.f32 %v444, %v427
      %v446 = vadd.f32 %v445, %v428
      %v447 = vadd.f32 %v446, %v429
      %v448 = vadd.f32 %v447, %v430
      %v449 = vadd.f32 %v448, %v431
      %v450 = vadd.f32 %v449, %v432
      %v451 = vadd.f32 %v450, %v433
      %v452 = vadd.f32 %v451, %v434
      %v453 = vadd.f32 %v452, %v435
      %v454 = vadd.f32 %v453, %v436
      %v455 = vadd.f32 %v454, %v437
      %v456 = vadd.f32 %v455, %v438
      %v457 = vadd.f32 %v456, %v439
      %v458 = vadd.f32 %v457, %v440
      %v459 = vrot.slane %v458, 4
      %v460 = vadd.f32 %v458, %v459
      %v461 = vrot.slane %v460, 2
      %v462 = vadd.f32 %v460, %v461
      %v463 = vrot.slane %v462, 1
      %v464 = vadd.f32 %v462, %v463
      %v465 = vstv %s442
      %v466 = vmul.f32 %v465, %v464
      %v467 = vadd.f32 %v443, %v466
      %468 = vst [vmem:[#allocation2] sm:$0x1] %v467
    $region17: #{tpu_custom_call.1} parent=1 // pred_fallthru
      _
    // Predicated region
    $region18: #{tpu_custom_call.1} parent=1 // pred_check
      _
    $region19: #{tpu_custom_call.1} parent=1 // pred_check_branch
      %470 = sbr.rel (0) target = $region21
    $region20: #{tpu_custom_call.1} parent=1 // pred_region
      %s472 = ssub.s32 16, 16
      %473 = vsyncadd [#allocation3], %s472
      %s475 = sshll.u32 [#allocation2], 4
      %s476 = int_to_ptr.vmem [resolvable:$true] %s475
      %478 = dma.vmem_to_hbm [thread:$0]  %s476, 16, %s2, [#allocation3]
    $region21: #{tpu_custom_call.1} parent=1 // pred_fallthru
      _
    // Predicated region
    $region22: #{tpu_custom_call.1} parent=1 // pred_check
      _
    $region23: #{tpu_custom_call.1} parent=1 // pred_check_branch
      %480 = sbr.rel (0) target = $region25
    $region24: #{tpu_custom_call.1} parent=1 // pred_region
      %481 = dma.done [#allocation3], 16
    $region25: #{tpu_custom_call.1} parent=1 // pred_fallthru
      _
    %482 = vsyncpa [#allocation3], 1

</llo_original>
